<compile_context>
chip_gen: v6e
topology: v6e:2x2x1
jax: 0.10.0
libtpu: 0.0.40
codegen_flags: <defaults>
</compile_context>

<pallas_src>
import jax
import jax.numpy as jnp
import numpy as np
from jax.experimental import pallas as pl
from jax.experimental.pallas import tpu as pltpu

_LANE = 128
_SUBLANE = 8

# Explicit scoped-VMEM request: fits v5e/v6e (128 MiB physical) and v7x
# (64 MiB per TensorCore) with headroom.
_VMEM_LIMIT_BYTES = 48 * 1024 * 1024
# Budget used when sizing the batch tile (headroom below the limit for
# compiler scratch, semaphores, pipelining state).
_TILE_BUDGET_BYTES = 40 * 1024 * 1024


def _round_up(x, m):
    return ((x + m - 1) // m) * m


def _resident_block_spec(shape):
    """BlockSpec for an operand whose index_map is constant across the grid
    (stays VMEM-resident).  Single-buffered when the JAX version supports
    pipeline_mode: double-buffering a never-changing block only doubles its
    VMEM footprint."""
    index_map = lambda i: (0,) * len(shape)
    if hasattr(pl, "Buffered"):
        try:
            return pl.BlockSpec(shape, index_map, pipeline_mode=pl.Buffered(1))
        except TypeError:
            pass  # older JAX: no pipeline_mode kwarg
    return pl.BlockSpec(shape, index_map)


def _linear_softmax_kernel(x_ref, w_ref, b_ref, o_ref):
    # x_ref: (TB, F) native dtype; w_ref: (F, O_pad) native dtype;
    # b_ref: (1, O_pad) f32 (padded columns hold -1e30); o_ref: (TB, O_pad).
    x = x_ref[...]
    w = w_ref[...]
    b = b_ref[...]

    # Linear: x @ W^T + b.  MXU consumes native dtype, accumulates in f32.
    logits = jnp.dot(x, w, preferred_element_type=jnp.float32) + b

    # Row-wise (dim=1) numerically stable softmax, all intermediates in f32.
    m = jnp.max(logits, axis=-1, keepdims=True)
    e = jnp.exp(logits - m)          # padded columns -> exp(~-inf) = 0
    s = jnp.sum(e, axis=-1, keepdims=True)
    o_ref[...] = (e / s).astype(o_ref.dtype)   # exact normalization


def prepare_params(weight, bias):
    """One-time parameter prep (call at init, NOT per forward).

    weight: (n_outputs, n_features) in PyTorch nn.Linear layout.
    bias:   (n_outputs,).
    Returns (w_t_padded (F, O_pad), bias_padded (1, O_pad) f32, n_outputs)
    where O_pad is a lane-dense multiple of 128; padded weight columns are 0
    and padded bias entries are -1e30 so padded logits vanish under softmax.
    """
    n_outputs, n_features = weight.shape
    o_pad = _round_up(max(n_outputs, _LANE), _LANE)
    pad = o_pad - n_outputs

    w_t = weight.T                                   # (F, O)
    bias_f32 = bias.astype(jnp.float32)
    if pad:
        w_t = jnp.pad(w_t, ((0, 0), (0, pad)))       # zero columns
        bias_f32 = jnp.concatenate(
            [bias_f32, jnp.full((pad,), -1e30, dtype=jnp.float32)])
    return w_t, bias_f32.reshape(1, o_pad), n_outputs


def _pick_batch_tile(B, F, O_pad, x_bytes, w_bytes, out_bytes):
    """Batch-tile rows that fit the VMEM budget, accounting for the resident
    W^T (worst-case 2 buffers), bias, double-buffered x/out tiles, and the
    f32 softmax intermediates (logits + exp)."""
    fixed = 2 * F * O_pad * w_bytes + 2 * O_pad * 4            # W^T + bias
    per_row = (2 * F * x_bytes                                  # x, double-buffered
               + 2 * O_pad * out_bytes                          # out, double-buffered
               + 2 * O_pad * 4)                                 # f32 logits + exp
    avail = max(_TILE_BUDGET_BYTES - fixed, per_row * _SUBLANE)
    tb = max(_SUBLANE, avail // per_row)
    tb = min(tb, 1024)                                          # diminishing returns

    # Megacore (v7x, 2 TCs): if the whole batch would fit one tile, split it so
    # the "parallel" grid axis has >= 2 steps and both cores get work.
    if B > _SUBLANE and tb >= B:
        tb = _round_up(-(-B // 2), _SUBLANE)

    # MXU-friendly rounding: multiples of 256 for big tiles, else 8.
    if tb >= 256:
        tb = (tb // 256) * 256
    else:
        tb = (tb // _SUBLANE) * _SUBLANE
    tb = max(tb, _SUBLANE)
    tb = min(tb, _round_up(B, _SUBLANE))
    return int(tb)


def model_forward(x, w_t_padded, bias_padded, n_outputs, *, block_b=None):
    """x: (B, n_features); w_t_padded: (n_features, O_pad); bias_padded:
    (1, O_pad) f32; returns softmax(x @ W^T + b, axis=1) of shape (B, n_outputs)."""
    B, F = x.shape
    O_pad = w_t_padded.shape[1]
    assert w_t_padded.shape[0] == F and O_pad % _LANE == 0

    x_bytes = jnp.dtype(x.dtype).itemsize
    w_bytes = jnp.dtype(w_t_padded.dtype).itemsize

    TB = block_b if block_b is not None else _pick_batch_tile(
        B, F, O_pad, x_bytes, w_bytes, x_bytes)
    grid = (pl.cdiv(B, TB),)

    cost = pl.CostEstimate(
        flops=int(2 * B * F * O_pad),
        transcendentals=int(B * O_pad),
        bytes_accessed=int((B * F + B * O_pad) * x_bytes
                           + F * O_pad * w_bytes + O_pad * 4),
    )

    out_padded = pl.pallas_call(
        _linear_softmax_kernel,
        out_shape=jax.ShapeDtypeStruct((B, O_pad), x.dtype),
        grid_spec=pltpu.PrefetchScalarGridSpec(
            num_scalar_prefetch=0,
            grid=grid,
            in_specs=[
                pl.BlockSpec((TB, F), lambda i: (i, 0)),        # x tile (pipelined)
                _resident_block_spec((F, O_pad)),               # W^T, VMEM-resident
                _resident_block_spec((1, O_pad)),               # bias, VMEM-resident
            ],
            out_specs=pl.BlockSpec((TB, O_pad), lambda i: (i, 0)),
        ),
        compiler_params=pltpu.CompilerParams(
            dimension_semantics=("parallel",),
            vmem_limit_bytes=_VMEM_LIMIT_BYTES,
        ),
        cost_estimate=cost,
    )(x, w_t_padded, bias_padded)

    # Module semantics return (B, n_outputs).  If a fused downstream consumer
    # can take the padded width, return out_padded instead to skip this copy.
    return out_padded[:, :n_outputs]


if __name__ == "__main__":
    # Small shapes consistent with the module: batch=8, n_features=32, n_outputs=16
    B, n_features, n_outputs = 8, 32, 16

    key = jax.random.PRNGKey(0)
    kx, kw, kb = jax.random.split(key, 3)

    x = jax.random.normal(kx, (B, n_features), dtype=jnp.float32)
    # Deterministic "nn.Linear"-style params (uniform in +/- 1/sqrt(fan_in))
    bound = 1.0 / jnp.sqrt(jnp.float32(n_features))
    weight = jax.random.uniform(kw, (n_outputs, n_features),
                                minval=-bound, maxval=bound, dtype=jnp.float32)
    bias = jax.random.uniform(kb, (n_outputs,),
                              minval=-bound, maxval=bound, dtype=jnp.float32)

    # One-time param prep (transpose + lane-dense pad), then the kernel call.
    w_t_padded, bias_padded, n_out = prepare_params(weight, bias)
    out = model_forward(x, w_t_padded, bias_padded, n_out)
    out = jax.block_until_ready(out)

    # Reference in float64 NumPy (robust to MXU vs CPU matmul rounding).
    xn = np.asarray(x, dtype=np.float64)
    wn = np.asarray(weight, dtype=np.float64)
    bn = np.asarray(bias, dtype=np.float64)
    logits = xn @ wn.T + bn
    en = np.exp(logits - logits.max(axis=1, keepdims=True))
    ref = (en / en.sum(axis=1, keepdims=True)).astype(np.float32)

    assert out.shape == (B, n_outputs)
    assert jnp.allclose(out, ref, atol=2e-3, rtol=2e-3)
    # Exact normalization inside the kernel -> rows sum to 1 within f32 eps.
    assert jnp.allclose(jnp.sum(out, axis=1), 1.0, atol=1e-5)

    print("KERNEL_OK")
</pallas_src>

<mosaic_0001>
module attributes {stable_mosaic.version = 11 : i64} {
  func.func @_linear_softmax_kernel(%arg0: i32, %arg1: memref<8x32xf32, #tpu.memory_space<vmem>>, %arg2: memref<32x128xf32, #tpu.memory_space<vmem>>, %arg3: memref<1x128xf32, #tpu.memory_space<vmem>>, %arg4: memref<8x128xf32, #tpu.memory_space<vmem>>) attributes {dimension_semantics = [#tpu.dimension_semantics<parallel>], iteration_bounds = array<i64: 1>, scalar_prefetch = 0 : i64, scratch_operands = 0 : i64, tpu.core_type = #tpu.core_type<tc>, window_params = [{transform_indices = @transform_0, window_bounds = array<i64: 8, 32>}, {pipeline_mode = #tpu.pipeline_mode<synchronous>, transform_indices = @transform_1, window_bounds = array<i64: 32, 128>}, {pipeline_mode = #tpu.pipeline_mode<synchronous>, transform_indices = @transform_2, window_bounds = array<i64: 1, 128>}, {transform_indices = @transform_3, window_bounds = array<i64: 8, 128>}]} {
    %c0 = arith.constant 0 : index
    %c0_0 = arith.constant 0 : index
    %0 = vector.load %arg1[%c0, %c0_0] : memref<8x32xf32, #tpu.memory_space<vmem>>, vector<8x32xf32>
    %c0_1 = arith.constant 0 : index
    %c0_2 = arith.constant 0 : index
    %1 = vector.load %arg2[%c0_1, %c0_2] : memref<32x128xf32, #tpu.memory_space<vmem>>, vector<32x128xf32>
    %c0_3 = arith.constant 0 : index
    %c0_4 = arith.constant 0 : index
    %2 = vector.load %arg3[%c0_3, %c0_4] : memref<1x128xf32, #tpu.memory_space<vmem>>, vector<1x128xf32>
    %cst = arith.constant dense<0.000000e+00> : vector<8x128xf32>
    %3 = tpu.matmul %0, %1, %cst {dimension_numbers = #tpu.dot_dimension_numbers<[1], [0], [0], [1], [0, 0, 1, 1], [], []>} : vector<8x32xf32>, vector<32x128xf32>, vector<8x128xf32> -> vector<8x128xf32>
    %4 = vector.broadcast %2 : vector<1x128xf32> to vector<8x128xf32>
    %5 = arith.addf %3, %4 : vector<8x128xf32>
    %cst_5 = arith.constant dense<0xFF800000> : vector<8xf32>
    %6 = vector.multi_reduction <maximumf>, %5, %cst_5 [1] : vector<8x128xf32> to vector<8xf32>
    %7 = vector.shape_cast %6 : vector<8xf32> to vector<8x1xf32>
    %8 = vector.broadcast %7 : vector<8x1xf32> to vector<8x128xf32>
    %9 = arith.subf %5, %8 : vector<8x128xf32>
    %10 = math.exp %9 : vector<8x128xf32>
    %cst_6 = arith.constant dense<0.000000e+00> : vector<8xf32>
    %11 = vector.multi_reduction <add>, %10, %cst_6 [1] : vector<8x128xf32> to vector<8xf32>
    %12 = vector.shape_cast %11 : vector<8xf32> to vector<8x1xf32>
    %13 = vector.broadcast %12 : vector<8x1xf32> to vector<8x128xf32>
    %14 = arith.divf %10, %13 : vector<8x128xf32>
    %c0_7 = arith.constant 0 : index
    %c0_8 = arith.constant 0 : index
    %15 = vector.load %arg4[%c0_7, %c0_8] : memref<8x128xf32, #tpu.memory_space<vmem>>, vector<8x128xf32>
    tpu.vector_store %arg4[%c0_7, %c0_8], %14 {strides = array<i32>} : memref<8x128xf32, #tpu.memory_space<vmem>>, vector<8x128xf32>,
    return
  }
  func.func @transform_0(%arg0: i32) -> (i32, i32) {
    %c0_i32 = arith.constant 0 : i32
    %c0_i32_0 = arith.constant 0 : i32
    return %arg0, %c0_i32 : i32, i32
  }
  func.func @transform_1(%arg0: i32) -> (i32, i32) {
    %c0_i32 = arith.constant 0 : i32
    %c0_i32_0 = arith.constant 0 : i32
    %c0_i32_1 = arith.constant 0 : i32
    return %c0_i32, %c0_i32_0 : i32, i32
  }
  func.func @transform_2(%arg0: i32) -> (i32, i32) {
    %c0_i32 = arith.constant 0 : i32
    %c0_i32_0 = arith.constant 0 : i32
    %c0_i32_1 = arith.constant 0 : i32
    return %c0_i32, %c0_i32_0 : i32, i32
  }
  func.func @transform_3(%arg0: i32) -> (i32, i32) {
    %c0_i32 = arith.constant 0 : i32
    %c0_i32_0 = arith.constant 0 : i32
    return %arg0, %c0_i32 : i32, i32
  }
}

</mosaic_0001>

<llo_original>
// kernel: tpu_custom_call.1
$region0: #{tpu_custom_call.1}
  #allocation0 [shape = 'u32[]', space=smem, size = 0x4, offset = 0x4, fixed_abs, tag = 'smem constant byte address 0x4 - core index']
  #allocation1 [shape = 'u32[144,128]{1,0:T(1,128)}', space=vmem, size = 0x12000, scoped, tag = 'internal scratch']
  %s0 = inlined_call_operand.hbm [shape: f32[8,32], index: 0, kind: input, shape index: {}]
  %s1 = inlined_call_operand.hbm [shape: f32[32,128], index: 1, kind: input, shape index: {}]
  %s2 = inlined_call_operand.vmem [shape: f32[1,128], index: 2, kind: input, shape index: {}]
  %s3 = inlined_call_operand.hbm [shape: f32[8,128], index: 3, kind: output, shape index: {}]
  %s4 = sld [smem:[#allocation0]]
  $region30: #{tpu_custom_call.1} parent=0
    _
  %s6 = ssub.s32 1, %s4
  %s7 = scalar_select 0, %s6, %s4
  $region1: #{tpu_custom_call.1} parent=0
    #allocation2 [shape = 'u8[4096]{0}', space=vmem, size = 0x1000, scoped, tag = 'input window, operand 0, single buffered']
    #allocation3 [shape = 's32[1]{0}', space=sflag, size = 0x4, scoped, tag = 'scoped memory for tpu_custom_call.1']
    #allocation4 [shape = 's32[1]{0}', space=sflag, size = 0x4, scoped, tag = 'scoped memory for tpu_custom_call.1']
    #allocation5 [shape = 'u8[16384]{0}', space=vmem, size = 0x4000, scoped, tag = 'input window, operand 1, single buffered']
    #allocation6 [shape = 's32[1]{0}', space=sflag, size = 0x4, scoped, tag = 'scoped memory for tpu_custom_call.1']
    #allocation7 [shape = 'u8[4096]{0}', space=vmem, size = 0x1000, scoped, tag = 'output window, operand 0, single buffered']
    %8 = vsyncpa [#allocation3], 0
    %9 = vsyncpa [#allocation6], 0
    %10 = vsyncpa [#allocation4], 0
    // Predicated region
    $region2: #{tpu_custom_call.1} parent=1 // pred_check
      _
    $region3: #{tpu_custom_call.1} parent=1 // pred_check_branch
      %12 = sbr.rel (0) target = $region5
    $region4: #{tpu_custom_call.1} parent=1 // pred_region
      %s14 = ssub.s32 128, 128
      %15 = vsyncadd [#allocation3], %s14
      %s17 = sshll.u32 [#allocation2], 4
      %s18 = int_to_ptr.vmem [resolvable:$true] %s17
      %20 = dma.hbm_to_vmem [thread:$0]  %s0, 128, %s18, [#allocation3]
    $region5: #{tpu_custom_call.1} parent=1 // pred_fallthru
      _
    // Predicated region
    $region6: #{tpu_custom_call.1} parent=1 // pred_check
      _
    $region7: #{tpu_custom_call.1} parent=1 // pred_check_branch
      %22 = sbr.rel (0) target = $region9
    $region8: #{tpu_custom_call.1} parent=1 // pred_region
      %s24 = ssub.s32 512, 512
      %25 = vsyncadd [#allocation6], %s24
      %s26 = sshll.u32 [#allocation5], 4
      %s27 = int_to_ptr.vmem [resolvable:$true] %s26
      %32 = dma.hbm_to_vmem [thread:$0]  %s1, 512, %s27, [#allocation6], 128, 128, 8
    $region9: #{tpu_custom_call.1} parent=1 // pred_fallthru
      _
    // Predicated region
    $region10: #{tpu_custom_call.1} parent=1 // pred_check
      _
    $region11: #{tpu_custom_call.1} parent=1 // pred_check_branch
      %34 = sbr.rel (0) target = $region13
    $region12: #{tpu_custom_call.1} parent=1 // pred_region
      _
    $region13: #{tpu_custom_call.1} parent=1 // pred_fallthru
      _
    // Predicated region
    $region14: #{tpu_custom_call.1} parent=1 // pred_check
      _
    $region15: #{tpu_custom_call.1} parent=1 // pred_check_branch
      %36 = sbr.rel (0) target = $region17
    $region16: #{tpu_custom_call.1} parent=1 // pred_region
      %37 = dma.done [#allocation3], 128
    $region17: #{tpu_custom_call.1} parent=1 // pred_fallthru
      _
    // Predicated region
    $region18: #{tpu_custom_call.1} parent=1 // pred_check
      _
    $region19: #{tpu_custom_call.1} parent=1 // pred_check_branch
      %39 = sbr.rel (0) target = $region21
    $region20: #{tpu_custom_call.1} parent=1 // pred_region
      %40 = dma.done [#allocation6], 512
    $region21: #{tpu_custom_call.1} parent=1 // pred_fallthru
      _
    %v41 = vld [vmem:[#allocation2] sm:$0xff]
    %v42 = vld [vmem:[#allocation5] sm:$0xff]
    %v43 = vld [vmem:[#allocation5 + $0x8] sm:$0xff]
    %v44 = vld [vmem:[#allocation5 + $0x10] sm:$0xff]
    %v45 = vld [vmem:[#allocation5 + $0x18] sm:$0xff]
    %v46 = vld [vmem:[%s2] sm:$0x1]
    %v48 = vlaneseq
    %v49 = vshrl.u32 %v48, 7
    %v50 = vsub.s32 0, %v49
    %v51 = vrot.slane %v46, %v50
    %vm53 = vcmask 261120
    %v55 = vsel %vm53, %v41, 0
    %57 = vmatprep.subr.mxu0 0.0
    %58 = vmatpush1.msra.mxu0 0.0
    %59 = vmatprep.subr.mxu0 0.0
    %60 = vmatpush1.msra.mxu0 0.0
    %61 = vmatprep.subr.mxu0 0.0
    %62 = vmatpush1.msra.mxu0 0.0
    %63 = vmatprep.subr.mxu0 0.0
    %64 = vmatpush1.msra.mxu0 0.0
    %65 = vmatprep.subr.mxu0 0.0
    %66 = vmatpush1.msra.mxu0 0.0
    %67 = vmatprep.subr.mxu0 0.0
    %68 = vmatpush1.msra.mxu0 0.0
    %69 = vmatprep.subr.mxu0 0.0
    %70 = vmatpush1.msra.mxu0 0.0
    %71 = vmatprep.subr.mxu0 0.0
    %72 = vmatpush1.msra.mxu0 0.0
    %73 = vmatprep.subr.mxu0 0.0
    %74 = vmatpush1.msra.mxu0 0.0
    %75 = vmatprep.subr.mxu0 0.0
    %76 = vmatpush1.msra.mxu0 0.0
    %77 = vmatprep.subr.mxu0 0.0
    %78 = vmatpush1.msra.mxu0 0.0
    %79 = vmatprep.subr.mxu0 0.0
    %80 = vmatpush1.msra.mxu0 0.0
    %81 = vmatprep.subr.mxu0 0.0
    %82 = vmatpush1.msra.mxu0 %v45
    %83 = vmatprep.subr.mxu0 0.0
    %84 = vmatpush1.msra.mxu0 %v44
    %85 = vmatprep.subr.mxu0 0.0
    %86 = vmatpush1.msra.mxu0 %v43
    %87 = vmatprep.subr.mxu0 0.0
    %88 = vmatpush1.msra.mxu0 %v42
    %89 = vmatprep.subr.mxu0 0.0
    %90 = vmatpush2.msra.mxu0 0.0
    %91 = vmatprep.subr.mxu0 0.0
    %92 = vmatpush2.msra.mxu0 0.0
    %93 = vmatprep.subr.mxu0 0.0
    %94 = vmatpush2.msra.mxu0 0.0
    %95 = vmatprep.subr.mxu0 0.0
    %96 = vmatpush2.msra.mxu0 0.0
    %97 = vmatprep.subr.mxu0 0.0
    %98 = vmatpush2.msra.mxu0 0.0
    %99 = vmatprep.subr.mxu0 0.0
    %100 = vmatpush2.msra.mxu0 0.0
    %101 = vmatprep.subr.mxu0 0.0
    %102 = vmatpush2.msra.mxu0 0.0
    %103 = vmatprep.subr.mxu0 0.0
    %104 = vmatpush2.msra.mxu0 0.0
    %105 = vmatprep.subr.mxu0 0.0
    %106 = vmatpush2.msra.mxu0 0.0
    %107 = vmatprep.subr.mxu0 0.0
    %108 = vmatpush2.msra.mxu0 0.0
    %109 = vmatprep.subr.mxu0 0.0
    %110 = vmatpush2.msra.mxu0 0.0
    %111 = vmatprep.subr.mxu0 0.0
    %112 = vmatpush2.msra.mxu0 0.0
    %113 = vmatprep.subr.mxu0 0.0
    %114 = vmatpush2.msra.mxu0 0.0
    %115 = vmatprep.subr.mxu0 0.0
    %116 = vmatpush2.msra.mxu0 0.0
    %117 = vmatprep.subr.mxu0 0.0
    %118 = vmatpush2.msra.mxu0 0.0
    %119 = vmatprep.subr.mxu0 0.0
    %120 = vmatpush2.msra.mxu0 0.0
    %121 = vmatprep.mubr.f32.mxu0 0.0
    %122 = vmatmul.mubr.f32.gmra.mxu0 %v55
    %v123 = vpop.f32.mrf.mxu0
    %v124 = vadd.f32 %v51, %v123
    %v125 = vpop.f32.mrf.mxu0
    %126 = vdwg.mxu0
    %127 = vmax.xlane.f32.xlu0 %v124
    %v128 = vpop.xlane.xlu0 %127
    %v129 = vsub.f32 %v124, %v128
    %v130 = vmul.f32 %v129, 1.442695
    %v131 = vpow.pop %v130
    %132 = vadd.xlane.f32.xlu0 %v131
    %v133 = vpop.xlane.xlu0 %132
    %v134 = vrcp.pop %v133
    %v135 = vmul.f32 %v131, %v134
    %136 = vst [vmem:[#allocation7] sm:$0xff] %v135
    // Predicated region
    $region22: #{tpu_custom_call.1} parent=1 // pred_check
      _
    $region23: #{tpu_custom_call.1} parent=1 // pred_check_branch
      %138 = sbr.rel (0) target = $region25
    $region24: #{tpu_custom_call.1} parent=1 // pred_region
      %s140 = ssub.s32 128, 128
      %141 = vsyncadd [#allocation4], %s140
      %s143 = sshll.u32 [#allocation7], 4
      %s144 = int_to_ptr.vmem [resolvable:$true] %s143
      %146 = dma.vmem_to_hbm [thread:$0]  %s144, 128, %s3, [#allocation4]
    $region25: #{tpu_custom_call.1} parent=1 // pred_fallthru
      _
    // Predicated region
    $region26: #{tpu_custom_call.1} parent=1 // pred_check
      _
    $region27: #{tpu_custom_call.1} parent=1 // pred_check_branch
      %148 = sbr.rel (0) target = $region29
    $region28: #{tpu_custom_call.1} parent=1 // pred_region
      %149 = dma.done [#allocation4], 128
    $region29: #{tpu_custom_call.1} parent=1 // pred_fallthru
      _
    %150 = vsyncpa [#allocation3], 1
    %151 = vsyncpa [#allocation6], 1
    %152 = vsyncpa [#allocation4], 1

</llo_original>
